<compile_context>
chip_gen: v7x
topology: tpu7x:2x2x1
jax: 0.10.0
libtpu: 0.0.40
codegen_flags: <defaults>
</compile_context>

<pallas_src>
import functools

import jax
import jax.numpy as jnp
from jax.experimental import pallas as pl
from jax.experimental.pallas import tpu as pltpu

_INV_SQRT2 = 0.7071067811865476


def qnetwork_kernel(x_ref, w1_ref, b1_ref, w2_ref, b2_ref, out_ref):
    # x is a natural-layout (TB, S) batch tile; weights are PyTorch (out, in).
    x = x_ref[...]                                                    # (TB, S)

    # fc1 in transposed orientation: contract the feature axis of BOTH operands
    # ((H, S) x (TB, S) -> (H, TB)); Mosaic resolves the transposed RHS on the
    # MXU feed, so no wrapper-level HBM transpose is needed.
    h = jax.lax.dot_general(
        w1_ref[...], x,
        dimension_numbers=(((1,), (1,)), ((), ())),
        preferred_element_type=jnp.float32) + b1_ref[...]             # (H, TB)

    # Exact (erf-based) GELU — matches torch.nn.functional.gelu default.
    a1 = 0.5 * h * (1.0 + jax.lax.erf(h * jnp.float32(_INV_SQRT2)))

    # fc2: (A, H) @ (H, TB) -> (A, TB)
    logits = jnp.dot(w2_ref[...], a1,
                     preferred_element_type=jnp.float32) + b2_ref[...]

    # Softmax over the ACTION axis (axis 0 in this orientation), max-stabilized.
    m = jnp.max(logits, axis=0, keepdims=True)
    e = jnp.exp(logits - m)
    denom = jnp.sum(e, axis=0, keepdims=True)
    # Exact reciprocal keeps 1e-5 parity with the PyTorch/JAX reference.
    out_ref[...] = e * pl.reciprocal(denom, approx=False)


def _choose_batch_tile(B):
    """Batch tile: multiple of 128 (lane-dense store), ~>=4 grid steps for
    DMA/compute overlap and v7x megacore, capped at 64K lanes so the
    double-buffered tiles + f32 temporaries stay well under v7x's 64 MiB."""
    if B < 256:
        return B                          # single full-array block (always legal)
    tb = min(65536, pl.cdiv(B, 4))
    tb = max(128, (tb // 128) * 128)
    return tb


@functools.partial(jax.jit, static_argnames=("tb",))
def qnetwork_forward(state, w1, b1, w2, b2, *, tb=None):
    """Forward pass.

    state: (B, state_size) float32          (natural PyTorch layout, no transpose)
    w1:    (hidden, state_size), b1: (hidden,)
    w2:    (action_size, hidden), b2: (action_size,)
    returns (B, action_size) softmax action probabilities.
    """
    B, S = state.shape
    H = w1.shape[0]
    A = w2.shape[0]

    if tb is None:
        TB = _choose_batch_tile(B)
    else:
        TB = B if tb >= B else max(128, (min(tb, B) // 128) * 128)

    # Ragged last block: OOB reads are unspecified, OOB writes are discarded.
    # Safe because batch columns are independent (no cross-column reduction).
    grid = (pl.cdiv(B, TB),)

    b1_c = b1.reshape(H, 1)
    b2_c = b2.reshape(A, 1)

    cost = pl.CostEstimate(
        flops=2 * B * (S * H + H * A),
        transcendentals=B * (H + A),                       # erf + exp
        bytes_accessed=(B * (S + A) + H * S + H + A * H + A) * 4,
    )

    # Explicit VMEM budget: double-buffered state/out tiles + f32 temporaries,
    # plus headroom; capped at 48 MiB so it also fits v7x's 64 MiB physical VMEM.
    per_lane_bytes = 2 * S * 4 + 2 * A * 4 + (3 * H + 4 * A) * 4
    vmem_limit = min(48 << 20, max(32 << 20, per_lane_bytes * TB + (4 << 20)))

    out_t = pl.pallas_call(
        qnetwork_kernel,
        out_shape=jax.ShapeDtypeStruct((A, B), jnp.float32),
        grid_spec=pltpu.PrefetchScalarGridSpec(
            num_scalar_prefetch=0,
            grid=grid,
            in_specs=[
                pl.BlockSpec((TB, S), lambda i: (i, 0)),    # streamed natural-layout state
                pl.BlockSpec((H, S), lambda i: (0, 0)),     # resident weights/biases
                pl.BlockSpec((H, 1), lambda i: (0, 0)),
                pl.BlockSpec((A, H), lambda i: (0, 0)),
                pl.BlockSpec((A, 1), lambda i: (0, 0)),
            ],
            out_specs=pl.BlockSpec((A, TB), lambda i: (0, i)),  # lane-dense output
        ),
        compiler_params=pltpu.CompilerParams(
            dimension_semantics=("parallel",),              # megacore on v7x
            vmem_limit_bytes=vmem_limit,
        ),
        cost_estimate=cost,
    )(state, w1, b1_c, w2, b2_c)

    # Module contract is (B, action_size); the (A, B) -> (B, A) transpose is
    # left to XLA (much cheaper than a 4-wide masked store inside the kernel).
    return out_t.T


def init_params(key, state_size, action_size, hidden=8):
    """Deterministic init mimicking nn.Linear's uniform(-1/sqrt(fan_in), ...)."""
    k1, k2, k3, k4 = jax.random.split(key, 4)
    bound1 = 1.0 / jnp.sqrt(state_size)
    bound2 = 1.0 / jnp.sqrt(hidden)
    # PyTorch-native layout: W (out_features, in_features), b (out_features,)
    w1 = jax.random.uniform(k1, (hidden, state_size), jnp.float32, -bound1, bound1)
    b1 = jax.random.uniform(k2, (hidden,), jnp.float32, -bound1, bound1)
    w2 = jax.random.uniform(k3, (action_size, hidden), jnp.float32, -bound2, bound2)
    b2 = jax.random.uniform(k4, (action_size,), jnp.float32, -bound2, bound2)
    return w1, b1, w2, b2


def _reference(state, w1, b1, w2, b2):
    h = state @ w1.T + b1
    a1 = jax.nn.gelu(h, approximate=False)
    logits = a1 @ w2.T + b2
    return jax.nn.softmax(logits, axis=1)


if __name__ == "__main__":
    state_size = 16
    action_size = 4
    hidden = 8

    key = jax.random.PRNGKey(0)
    k_params, k_small, k_big, k_ragged = jax.random.split(key, 4)
    w1, b1, w2, b2 = init_params(k_params, state_size, action_size, hidden)

    # 1) Small batch (single full block, grid of 1) — matches the module spec.
    state_small = jax.random.normal(k_small, (2, state_size), jnp.float32)
    out_small = jax.block_until_ready(qnetwork_forward(state_small, w1, b1, w2, b2))
    ref_small = _reference(state_small, w1, b1, w2, b2)
    assert out_small.shape == (2, action_size)
    assert jnp.allclose(out_small, ref_small, atol=1e-5, rtol=1e-5)
    assert jnp.allclose(jnp.sum(out_small, axis=1), 1.0, atol=1e-5)

    # 2) Larger batch with a derived batch grid (4 tiles of 1024 lanes) to
    #    exercise the pipelined / megacore-parallel path.
    state_big = jax.random.normal(k_big, (4096, state_size), jnp.float32)
    out_big = jax.block_until_ready(qnetwork_forward(state_big, w1, b1, w2, b2))
    ref_big = _reference(state_big, w1, b1, w2, b2)
    assert out_big.shape == (4096, action_size)
    assert jnp.allclose(out_big, ref_big, atol=1e-5, rtol=1e-5)

    # 3) Ragged batch: B not a multiple of the tile — no jnp.pad, the final
    #    block runs over the edge and OOB writes are discarded.
    state_ragged = jax.random.normal(k_ragged, (300, state_size), jnp.float32)
    out_ragged = jax.block_until_ready(
        qnetwork_forward(state_ragged, w1, b1, w2, b2, tb=128))
    ref_ragged = _reference(state_ragged, w1, b1, w2, b2)
    assert out_ragged.shape == (300, action_size)
    assert jnp.allclose(out_ragged, ref_ragged, atol=1e-5, rtol=1e-5)

    print("KERNEL_OK")
</pallas_src>

<mosaic_0001>
module attributes {stable_mosaic.version = 11 : i64} {
  func.func @qnetwork_kernel(%arg0: i32, %arg1: memref<2x16xf32, #tpu.memory_space<vmem>>, %arg2: memref<8x16xf32, #tpu.memory_space<vmem>>, %arg3: memref<8x1xf32, #tpu.memory_space<vmem>>, %arg4: memref<4x8xf32, #tpu.memory_space<vmem>>, %arg5: memref<4x1xf32, #tpu.memory_space<vmem>>, %arg6: memref<4x2xf32, #tpu.memory_space<vmem>>) attributes {dimension_semantics = [#tpu.dimension_semantics<parallel>], iteration_bounds = array<i64: 1>, scalar_prefetch = 0 : i64, scratch_operands = 0 : i64, tpu.core_type = #tpu.core_type<tc>, window_params = [{transform_indices = @transform_0, window_bounds = array<i64: 2, 16>}, {pipeline_mode = #tpu.pipeline_mode<synchronous>, transform_indices = @transform_1, window_bounds = array<i64: 8, 16>}, {pipeline_mode = #tpu.pipeline_mode<synchronous>, transform_indices = @transform_2, window_bounds = array<i64: 8, 1>}, {pipeline_mode = #tpu.pipeline_mode<synchronous>, transform_indices = @transform_3, window_bounds = array<i64: 4, 8>}, {pipeline_mode = #tpu.pipeline_mode<synchronous>, transform_indices = @transform_4, window_bounds = array<i64: 4, 1>}, {transform_indices = @transform_5, window_bounds = array<i64: 4, 2>}]} {
    %c0 = arith.constant 0 : index
    %c0_0 = arith.constant 0 : index
    %0 = vector.load %arg1[%c0, %c0_0] : memref<2x16xf32, #tpu.memory_space<vmem>>, vector<2x16xf32>
    %c0_1 = arith.constant 0 : index
    %c0_2 = arith.constant 0 : index
    %1 = vector.load %arg2[%c0_1, %c0_2] : memref<8x16xf32, #tpu.memory_space<vmem>>, vector<8x16xf32>
    %cst = arith.constant dense<0.000000e+00> : vector<8x2xf32>
    %2 = tpu.matmul %1, %0, %cst {dimension_numbers = #tpu.dot_dimension_numbers<[1], [1], [0], [0], [0, 0, 1, 0], [], []>} : vector<8x16xf32>, vector<2x16xf32>, vector<8x2xf32> -> vector<8x2xf32>
    %c0_3 = arith.constant 0 : index
    %c0_4 = arith.constant 0 : index
    %3 = vector.load %arg3[%c0_3, %c0_4] : memref<8x1xf32, #tpu.memory_space<vmem>>, vector<8x1xf32>
    %4 = vector.broadcast %3 : vector<8x1xf32> to vector<8x2xf32>
    %5 = arith.addf %2, %4 : vector<8x2xf32>
    %cst_5 = arith.constant 5.000000e-01 : f32
    %6 = vector.broadcast %cst_5 : f32 to vector<8x2xf32>
    %7 = arith.mulf %6, %5 : vector<8x2xf32>
    %cst_6 = arith.constant 0.707106769 : f32
    %8 = vector.broadcast %cst_6 : f32 to vector<8x2xf32>
    %9 = arith.mulf %5, %8 : vector<8x2xf32>
    %10 = math.erf %9 : vector<8x2xf32>
    %cst_7 = arith.constant 1.000000e+00 : f32
    %11 = vector.broadcast %cst_7 : f32 to vector<8x2xf32>
    %12 = arith.addf %11, %10 : vector<8x2xf32>
    %13 = arith.mulf %7, %12 : vector<8x2xf32>
    %c0_8 = arith.constant 0 : index
    %c0_9 = arith.constant 0 : index
    %14 = vector.load %arg4[%c0_8, %c0_9] : memref<4x8xf32, #tpu.memory_space<vmem>>, vector<4x8xf32>
    %cst_10 = arith.constant dense<0.000000e+00> : vector<4x2xf32>
    %15 = tpu.matmul %14, %13, %cst_10 {dimension_numbers = #tpu.dot_dimension_numbers<[1], [0], [0], [1], [0, 0, 1, 1], [], []>} : vector<4x8xf32>, vector<8x2xf32>, vector<4x2xf32> -> vector<4x2xf32>
    %c0_11 = arith.constant 0 : index
    %c0_12 = arith.constant 0 : index
    %16 = vector.load %arg5[%c0_11, %c0_12] : memref<4x1xf32, #tpu.memory_space<vmem>>, vector<4x1xf32>
    %17 = vector.broadcast %16 : vector<4x1xf32> to vector<4x2xf32>
    %18 = arith.addf %15, %17 : vector<4x2xf32>
    %cst_13 = arith.constant dense<0xFF800000> : vector<2xf32>
    %19 = vector.multi_reduction <maximumf>, %18, %cst_13 [0] : vector<4x2xf32> to vector<2xf32>
    %20 = vector.shape_cast %19 : vector<2xf32> to vector<1x2xf32>
    %21 = vector.broadcast %20 : vector<1x2xf32> to vector<4x2xf32>
    %22 = arith.subf %18, %21 : vector<4x2xf32>
    %23 = math.exp %22 : vector<4x2xf32>
    %cst_14 = arith.constant dense<0.000000e+00> : vector<2xf32>
    %24 = vector.multi_reduction <add>, %23, %cst_14 [0] : vector<4x2xf32> to vector<2xf32>
    %25 = vector.shape_cast %24 : vector<2xf32> to vector<1x2xf32>
    %26 = tpu.reciprocal %25 : vector<1x2xf32> -> vector<1x2xf32>
    %27 = vector.broadcast %26 : vector<1x2xf32> to vector<4x2xf32>
    %28 = arith.mulf %23, %27 : vector<4x2xf32>
    %c0_15 = arith.constant 0 : index
    %c0_16 = arith.constant 0 : index
    %29 = vector.load %arg6[%c0_15, %c0_16] : memref<4x2xf32, #tpu.memory_space<vmem>>, vector<4x2xf32>
    tpu.vector_store %arg6[%c0_15, %c0_16], %28 {strides = array<i32>} : memref<4x2xf32, #tpu.memory_space<vmem>>, vector<4x2xf32>,
    return
  }
  func.func @transform_0(%arg0: i32) -> (i32, i32) {
    %c0_i32 = arith.constant 0 : i32
    %c0_i32_0 = arith.constant 0 : i32
    return %arg0, %c0_i32 : i32, i32
  }
  func.func @transform_1(%arg0: i32) -> (i32, i32) {
    %c0_i32 = arith.constant 0 : i32
    %c0_i32_0 = arith.constant 0 : i32
    %c0_i32_1 = arith.constant 0 : i32
    return %c0_i32, %c0_i32_0 : i32, i32
  }
  func.func @transform_2(%arg0: i32) -> (i32, i32) {
    %c0_i32 = arith.constant 0 : i32
    %c0_i32_0 = arith.constant 0 : i32
    %c0_i32_1 = arith.constant 0 : i32
    return %c0_i32, %c0_i32_0 : i32, i32
  }
  func.func @transform_3(%arg0: i32) -> (i32, i32) {
    %c0_i32 = arith.constant 0 : i32
    %c0_i32_0 = arith.constant 0 : i32
    %c0_i32_1 = arith.constant 0 : i32
    return %c0_i32, %c0_i32_0 : i32, i32
  }
  func.func @transform_4(%arg0: i32) -> (i32, i32) {
    %c0_i32 = arith.constant 0 : i32
    %c0_i32_0 = arith.constant 0 : i32
    %c0_i32_1 = arith.constant 0 : i32
    return %c0_i32, %c0_i32_0 : i32, i32
  }
  func.func @transform_5(%arg0: i32) -> (i32, i32) {
    %c0_i32 = arith.constant 0 : i32
    %c0_i32_0 = arith.constant 0 : i32
    return %c0_i32, %arg0 : i32, i32
  }
}

</mosaic_0001>

<llo_original>
// kernel: qnetwork_forward.1
$region0: #{qnetwork_forward.1}
  #allocation0 [shape = 'u32[]', space=smem, size = 0x4, offset = 0x4, fixed_abs, tag = 'smem constant byte address 0x4 - core index']
  #allocation1 [shape = 'u32[144,128]{1,0:T(1,128)}', space=vmem, size = 0x12000, scoped, tag = 'internal scratch']
  %s0 = inlined_call_operand.vmem [shape: f32[2,16], index: 0, kind: input, shape index: {}]
  %s1 = inlined_call_operand.vmem [shape: f32[8,16], index: 1, kind: input, shape index: {}]
  %s2 = inlined_call_operand.vmem [shape: f32[8,1], index: 2, kind: input, shape index: {}]
  %s3 = inlined_call_operand.vmem [shape: f32[4,8], index: 3, kind: input, shape index: {}]
  %s4 = inlined_call_operand.vmem [shape: f32[4,1], index: 4, kind: input, shape index: {}]
  %s5 = inlined_call_operand.vmem [shape: f32[4,2], index: 5, kind: output, shape index: {}]
  %s6 = sld [smem:[#allocation0]]
  $region30: #{qnetwork_forward.1} parent=0
    _
  %s8 = ssub.s32 1, %s6
  %s9 = scalar_select 0, %s8, %s6
  // Predicated region
  $region2: #{qnetwork_forward.1} parent=0 // pred_check
    _
  $region3: #{qnetwork_forward.1} parent=0 // pred_check_branch
    %11 = sbr.rel (0) target = $region5
  $region4: #{qnetwork_forward.1} parent=0 // pred_region
    _
  $region5: #{qnetwork_forward.1} parent=0 // pred_fallthru
    _
  // Predicated region
  $region6: #{qnetwork_forward.1} parent=0 // pred_check
    _
  $region7: #{qnetwork_forward.1} parent=0 // pred_check_branch
    %13 = sbr.rel (0) target = $region9
  $region8: #{qnetwork_forward.1} parent=0 // pred_region
    _
  $region9: #{qnetwork_forward.1} parent=0 // pred_fallthru
    _
  // Predicated region
  $region10: #{qnetwork_forward.1} parent=0 // pred_check
    _
  $region11: #{qnetwork_forward.1} parent=0 // pred_check_branch
    %15 = sbr.rel (0) target = $region13
  $region12: #{qnetwork_forward.1} parent=0 // pred_region
    _
  $region13: #{qnetwork_forward.1} parent=0 // pred_fallthru
    _
  // Predicated region
  $region14: #{qnetwork_forward.1} parent=0 // pred_check
    _
  $region15: #{qnetwork_forward.1} parent=0 // pred_check_branch
    %17 = sbr.rel (0) target = $region17
  $region16: #{qnetwork_forward.1} parent=0 // pred_region
    _
  $region17: #{qnetwork_forward.1} parent=0 // pred_fallthru
    _
  // Predicated region
  $region18: #{qnetwork_forward.1} parent=0 // pred_check
    _
  $region19: #{qnetwork_forward.1} parent=0 // pred_check_branch
    %19 = sbr.rel (0) target = $region21
  $region20: #{qnetwork_forward.1} parent=0 // pred_region
    _
  $region21: #{qnetwork_forward.1} parent=0 // pred_fallthru
    _
  %v20 = vld [vmem:[%s0] sm:$0x3]
  %v21 = vld [vmem:[%s1] sm:$0xff]
  %v22 = vld [vmem:[%s2] sm:$0xff]
  %24 = vset.pattern.permute.xlu0 0
  %25 = vperm.xlu0 %24, %v22
  %v26 = vpop.permute.xlu0 %25
  %vm28 = vcmask 130048
  %v30 = vsel %vm28, %v21, 0
  %v33 = vsel %vm28, %v20, 0
  %35 = vmatprep.subr.mxu0 0.0
  %36 = vmatpush1.xpose.msra.mxu0 %v33
  %37 = vmatprep.subr.mxu0 0.0
  %38 = vmatpush1.xpose.msra.mxu0 0.0
  %39 = vmatprep.subr.mxu0 0.0
  %40 = vmatpush1.xpose.msra.mxu0 0.0
  %41 = vmatprep.subr.mxu0 0.0
  %42 = vmatpush1.xpose.msra.mxu0 0.0
  %43 = vmatprep.subr.mxu0 0.0
  %44 = vmatpush1.xpose.msra.mxu0 0.0
  %45 = vmatprep.subr.mxu0 0.0
  %46 = vmatpush1.xpose.msra.mxu0 0.0
  %47 = vmatprep.subr.mxu0 0.0
  %48 = vmatpush1.xpose.msra.mxu0 0.0
  %49 = vmatprep.subr.mxu0 0.0
  %50 = vmatpush1.xpose.msra.mxu0 0.0
  %51 = vmatprep.subr.mxu0 0.0
  %52 = vmatpush1.xpose.msra.mxu0 0.0
  %53 = vmatprep.subr.mxu0 0.0
  %54 = vmatpush1.xpose.msra.mxu0 0.0
  %55 = vmatprep.subr.mxu0 0.0
  %56 = vmatpush1.xpose.msra.mxu0 0.0
  %57 = vmatprep.subr.mxu0 0.0
  %58 = vmatpush1.xpose.msra.mxu0 0.0
  %59 = vmatprep.subr.mxu0 0.0
  %60 = vmatpush1.xpose.msra.mxu0 0.0
  %61 = vmatprep.subr.mxu0 0.0
  %62 = vmatpush1.xpose.msra.mxu0 0.0
  %63 = vmatprep.subr.mxu0 0.0
  %64 = vmatpush1.xpose.msra.mxu0 0.0
  %65 = vmatprep.subr.mxu0 0.0
  %66 = vmatpush1.xpose.msra.mxu0 0.0
  %67 = vmatprep.subr.mxu0 0.0
  %68 = vmatpush1.xpose.msra.mxu0 0.0
  %69 = vmatprep.subr.mxu0 0.0
  %70 = vmatpush1.xpose.msra.mxu0 0.0
  %71 = vmatprep.subr.mxu0 0.0
  %72 = vmatpush1.xpose.msra.mxu0 0.0
  %73 = vmatprep.subr.mxu0 0.0
  %74 = vmatpush1.xpose.msra.mxu0 0.0
  %75 = vmatprep.subr.mxu0 0.0
  %76 = vmatpush1.xpose.msra.mxu0 0.0
  %77 = vmatprep.subr.mxu0 0.0
  %78 = vmatpush1.xpose.msra.mxu0 0.0
  %79 = vmatprep.subr.mxu0 0.0
  %80 = vmatpush1.xpose.msra.mxu0 0.0
  %81 = vmatprep.subr.mxu0 0.0
  %82 = vmatpush1.xpose.msra.mxu0 0.0
  %83 = vmatprep.subr.mxu0 0.0
  %84 = vmatpush1.xpose.msra.mxu0 0.0
  %85 = vmatprep.subr.mxu0 0.0
  %86 = vmatpush1.xpose.msra.mxu0 0.0
  %87 = vmatprep.subr.mxu0 0.0
  %88 = vmatpush1.xpose.msra.mxu0 0.0
  %89 = vmatprep.subr.mxu0 0.0
  %90 = vmatpush1.xpose.msra.mxu0 0.0
  %91 = vmatprep.subr.mxu0 0.0
  %92 = vmatpush1.xpose.msra.mxu0 0.0
  %93 = vmatprep.subr.mxu0 0.0
  %94 = vmatpush1.xpose.msra.mxu0 0.0
  %95 = vmatprep.subr.mxu0 0.0
  %96 = vmatpush1.xpose.msra.mxu0 0.0
  %97 = vmatprep.subr.mxu0 0.0
  %98 = vmatpush1.xpose.msra.mxu0 0.0
  %99 = vmatprep.mubr.f32.mxu0 0.0
  %100 = vmatmul.mubr.f32.gmra.mrb[0].mxu0 %v30
  %v101 = vpop.f32.mrb[0].mxu0
  %v102 = vadd.f32 %v26, %v101
  %v103 = vpop.f32.mrb[0].mxu0
  %104 = vdwg.mxu0
  %v105 = vmul.f32 %v102, 0.5
  %v106 = vmul.f32 %v102, 0.70710677
  %v107 = verf.f32.pop %v106
  %v108 = vadd.f32 %v107, 1.0
  %v109 = vmul.f32 %v105, %v108
  %v110 = vld [vmem:[%s3] sm:$0xf]
  %v111 = vld [vmem:[%s4] sm:$0xf]
  %113 = vset.pattern.permute.xlu0 0
  %114 = vperm.xlu0 %113, %v111
  %v115 = vpop.permute.xlu0 %114
  %vm117 = vcmask 64512
  %v119 = vsel %vm117, %v110, 0
  %121 = vmatprep.subr.mxu0 0.0
  %122 = vmatpush1.msra.mxu0 %v109
  %123 = vmatprep.subr.mxu0 0.0
  %124 = vmatpush1.msra.mxu0 0.0
  %125 = vmatprep.subr.mxu0 0.0
  %126 = vmatpush1.msra.mxu0 0.0
  %127 = vmatprep.subr.mxu0 0.0
  %128 = vmatpush1.msra.mxu0 0.0
  %129 = vmatprep.subr.mxu0 0.0
  %130 = vmatpush1.msra.mxu0 0.0
  %131 = vmatprep.subr.mxu0 0.0
  %132 = vmatpush1.msra.mxu0 0.0
  %133 = vmatprep.subr.mxu0 0.0
  %134 = vmatpush1.msra.mxu0 0.0
  %135 = vmatprep.subr.mxu0 0.0
  %136 = vmatpush1.msra.mxu0 0.0
  %137 = vmatprep.subr.mxu0 0.0
  %138 = vmatpush1.msra.mxu0 0.0
  %139 = vmatprep.subr.mxu0 0.0
  %140 = vmatpush1.msra.mxu0 0.0
  %141 = vmatprep.subr.mxu0 0.0
  %142 = vmatpush1.msra.mxu0 0.0
  %143 = vmatprep.subr.mxu0 0.0
  %144 = vmatpush1.msra.mxu0 0.0
  %145 = vmatprep.subr.mxu0 0.0
  %146 = vmatpush1.msra.mxu0 0.0
  %147 = vmatprep.subr.mxu0 0.0
  %148 = vmatpush1.msra.mxu0 0.0
  %149 = vmatprep.subr.mxu0 0.0
  %150 = vmatpush1.msra.mxu0 0.0
  %151 = vmatprep.subr.mxu0 0.0
  %152 = vmatpush1.msra.mxu0 0.0
  %153 = vmatprep.subr.mxu0 0.0
  %154 = vmatpush1.msra.mxu0 0.0
  %155 = vmatprep.subr.mxu0 0.0
  %156 = vmatpush1.msra.mxu0 0.0
  %157 = vmatprep.subr.mxu0 0.0
  %158 = vmatpush1.msra.mxu0 0.0
  %159 = vmatprep.subr.mxu0 0.0
  %160 = vmatpush1.msra.mxu0 0.0
  %161 = vmatprep.subr.mxu0 0.0
  %162 = vmatpush1.msra.mxu0 0.0
  %163 = vmatprep.subr.mxu0 0.0
  %164 = vmatpush1.msra.mxu0 0.0
  %165 = vmatprep.subr.mxu0 0.0
  %166 = vmatpush1.msra.mxu0 0.0
  %167 = vmatprep.subr.mxu0 0.0
  %168 = vmatpush1.msra.mxu0 0.0
  %169 = vmatprep.subr.mxu0 0.0
  %170 = vmatpush1.msra.mxu0 0.0
  %171 = vmatprep.subr.mxu0 0.0
  %172 = vmatpush1.msra.mxu0 0.0
  %173 = vmatprep.subr.mxu0 0.0
  %174 = vmatpush1.msra.mxu0 0.0
  %175 = vmatprep.subr.mxu0 0.0
  %176 = vmatpush1.msra.mxu0 0.0
  %177 = vmatprep.subr.mxu0 0.0
  %178 = vmatpush1.msra.mxu0 0.0
  %179 = vmatprep.subr.mxu0 0.0
  %180 = vmatpush1.msra.mxu0 0.0
  %181 = vmatprep.subr.mxu0 0.0
  %182 = vmatpush1.msra.mxu0 0.0
  %183 = vmatprep.subr.mxu0 0.0
  %184 = vmatpush1.msra.mxu0 0.0
  %185 = vmatprep.mubr.f32.mxu0 0.0
  %186 = vmatmul.mubr.f32.gmra.mrb[0].mxu0 %v119
  %v187 = vpop.f32.mrb[0].mxu0
  %v188 = vadd.f32 %v115, %v187
  %v189 = vpop.f32.mrb[0].mxu0
  %190 = vdwg.mxu0
  %vm191 = vcmask 11264
  %v192 = vsel %vm191, %v188, -inf
  %v193 = vrot.slane %v192, 4
  %v194 = vmax.f32 %v192, %v193
  %v195 = vrot.slane %v194, 2
  %v196 = vmax.f32 %v194, %v195
  %v197 = vrot.slane %v196, 1
  %v198 = vmax.f32 %v196, %v197
  %v199 = vsub.f32 %v188, %v198
  %v200 = vmul.f32 %v199, 1.442695
  %v201 = vpow.pop %v200
  %v202 = vsel %vm191, %v201, 0.0
  %v203 = vrot.slane %v202, 4
  %v204 = vadd.f32 %v202, %v203
  %v205 = vrot.slane %v204, 2
  %v206 = vadd.f32 %v204, %v205
  %v207 = vrot.slane %v206, 1
  %v208 = vadd.f32 %v206, %v207
  %v209 = vrcp.pop %v208
  %v210 = vmul.f32 %v201, %v209
  %211 = vst.msk [vmem:[%s5] sm:$0xf] %vm191, %v210
  // Predicated region
  $region22: #{qnetwork_forward.1} parent=0 // pred_check
    _
  $region23: #{qnetwork_forward.1} parent=0 // pred_check_branch
    %213 = sbr.rel (0) target = $region25
  $region24: #{qnetwork_forward.1} parent=0 // pred_region
    _
  $region25: #{qnetwork_forward.1} parent=0 // pred_fallthru
    _
  // Predicated region
  $region26: #{qnetwork_forward.1} parent=0 // pred_check
    _
  $region27: #{qnetwork_forward.1} parent=0 // pred_check_branch
    %215 = sbr.rel (0) target = $region29
  $region28: #{qnetwork_forward.1} parent=0 // pred_region
    _
  $region29: #{qnetwork_forward.1} parent=0 // pred_fallthru
    _

</llo_original>
